<compile_context>
chip_gen: v7x
topology: tpu7x:2x2x1
jax: 0.10.0
libtpu: 0.0.40
codegen_flags: <defaults>
</compile_context>

<pallas_src>
import jax
import jax.numpy as jnp
from jax.experimental import pallas as pl
from jax.experimental.pallas import tpu as pltpu


def _round_up(x, m):
    return ((x + m - 1) // m) * m


_TILE_CANDIDATES = (1024, 896, 768, 640, 512, 384, 256, 128)


def _pick_tile(dim, align, target, candidates=_TILE_CANDIDATES):
    """Pick a tile size (multiple of `align`, <= target) minimizing pad waste.

    Returns (tile, padded_dim).  If the align-rounded dim already fits under
    `target`, use the whole dim as a single tile (no grid split, no padding
    beyond alignment).
    """
    dim_a = _round_up(dim, align)
    if dim_a <= target:
        return dim_a, dim_a
    best_key, best = None, None
    for c in candidates:
        if c > target or c % align:
            continue
        padded = _round_up(dim_a, c)
        key = (padded - dim_a, -c)          # least padding waste, then biggest tile
        if best_key is None or key < best_key:
            best_key, best = key, (c, padded)
    if best is None:                         # fallback: single full-size tile
        return dim_a, dim_a
    return best


def _mnf_linear_kernel(x_ref, aux_ref, mean_ref, var_ref, noise_ref, out_ref,
                       acc_mean, acc_var):
    k = pl.program_id(2)

    @pl.when(k == 0)
    def _init():
        acc_mean[...] = jnp.zeros_like(acc_mean)
        acc_var[...] = jnp.zeros_like(acc_var)

    # Fused elementwise prep on the VPU (f32 math -> bf16 just before the MXU).
    xf = x_ref[...].astype(jnp.float32)                     # (tm, tk)
    xa = (xf * aux_ref[...]).astype(jnp.bfloat16)           # aux * features
    x2 = (xf * xf).astype(jnp.bfloat16)                     # features ** 2

    # Two MXU matmuls with f32 accumulation.
    acc_mean[...] += jnp.dot(xa, mean_ref[...],
                             preferred_element_type=jnp.float32)
    acc_var[...] += jnp.dot(x2, var_ref[...],
                            preferred_element_type=jnp.float32)

    @pl.when(k == pl.num_programs(2) - 1)
    def _finalize():
        # sqrt lives in the EUP slot (free relative to MXU/DMA); epilogue in f32.
        out_ref[...] = (acc_mean[...]
                        + jnp.sqrt(acc_var[...])
                        * noise_ref[...].astype(jnp.float32)
                        ).astype(out_ref.dtype)


def mnf_linear_forward(features, aux, mean, variance, noise):
    """features: (B, Cin); aux: (Cin,); mean/variance: (Cin, Cout); noise: (B, Cout)."""
    B, Cin = features.shape
    Cin_m, Cout = mean.shape
    assert Cin_m == Cin and noise.shape == (B, Cout)

    # ---- generation-aware tile targets -------------------------------------
    try:
        vmem_cap = pltpu.get_tpu_info().vmem_capacity_bytes
    except Exception:
        vmem_cap = 64 << 20
    two_tc = vmem_cap < (100 << 20)     # 64-MiB-VMEM generation: 2 TCs per chip
    if two_tc:
        tm_target, tn_target, tk_target = 512, 512, 512
    else:                               # 128-MiB-VMEM generation: 1 TC per chip
        tm_target, tn_target, tk_target = 1024, 768, 512

    # Divisor-aware tile selection (tm aligned to 16 for bf16 sublane packing).
    tm, Bp = _pick_tile(B, 16, tm_target)
    tn, Coutp = _pick_tile(Cout, 128, tn_target)
    tk, Cinp = _pick_tile(Cin, 128, tk_target)

    # On the 2-TensorCore generation make sure the parallel plane has >= 2 tiles.
    if two_tc and (Bp // tm) * (Coutp // tn) < 2:
        if tn >= 256 and (tn // 2) % 128 == 0:
            tn //= 2
        elif tm >= 32 and (tm // 2) % 16 == 0:
            tm //= 2
    # TODO(synk): tiny (1,1,1)-grid shapes (e.g. B=8, Cout=64) are latency-bound;
    # batching several calls or plain XLA may be preferable there.

    # ---- padding only when shapes are actually unaligned -------------------
    def _pad2(x, rows, cols):
        pr, pc = rows - x.shape[0], cols - x.shape[1]
        return jnp.pad(x, ((0, pr), (0, pc))) if (pr or pc) else x

    # NOTE: mean/variance padding could be hoisted to parameter-prep time; it is
    # a no-op here for tile-aligned parameter shapes.
    f_b = _pad2(features.astype(jnp.bfloat16), Bp, Cinp)          # bf16 LHS stream
    aux_p = _pad2(aux.astype(jnp.float32).reshape(1, Cin), 1, Cinp)
    mean_p = _pad2(mean.astype(jnp.bfloat16), Cinp, Coutp)
    var_p = _pad2(variance.astype(jnp.bfloat16), Cinp, Coutp)
    noise_p = _pad2(noise.astype(jnp.bfloat16), Bp, Coutp)        # bf16 noise plane

    grid = (Bp // tm, Coutp // tn, Cinp // tk)

    # Double-buffered-input + output + accumulator VMEM estimate (bytes).
    vmem_bytes = (2 * (tm * tk * 2          # features (bf16)
                       + tk * 4             # aux (f32)
                       + 2 * tk * tn * 2    # mean + variance (bf16)
                       + tm * tn * 2)       # noise (bf16)
                  + 2 * tm * tn * 4         # output (f32)
                  + 2 * tm * tn * 4)        # two f32 accumulators
    vmem_limit = max(32 << 20,
                     min(int(vmem_bytes * 1.5) + (4 << 20), int(vmem_cap * 3 // 4)))

    cost = pl.CostEstimate(
        flops=4 * Bp * Cinp * Coutp + 3 * Bp * Cinp,   # two matmuls + fused prep
        transcendentals=Bp * Coutp,                    # sqrt
        bytes_accessed=(Bp * Cinp * 2                  # features (bf16)
                        + Cinp * 4                     # aux (f32)
                        + 2 * Cinp * Coutp * 2         # mean, variance (bf16)
                        + Bp * Coutp * 2               # noise (bf16)
                        + Bp * Coutp * 4),             # output (f32)
    )

    out_p = pl.pallas_call(
        _mnf_linear_kernel,
        out_shape=jax.ShapeDtypeStruct((Bp, Coutp), jnp.float32),
        grid_spec=pltpu.PrefetchScalarGridSpec(
            num_scalar_prefetch=0,
            grid=grid,
            in_specs=[
                pl.BlockSpec((tm, tk), lambda i, j, k: (i, k)),   # features (bf16)
                pl.BlockSpec((1, tk), lambda i, j, k: (0, k)),    # aux row (f32)
                pl.BlockSpec((tk, tn), lambda i, j, k: (k, j)),   # mean (bf16)
                pl.BlockSpec((tk, tn), lambda i, j, k: (k, j)),   # variance (bf16)
                pl.BlockSpec((tm, tn), lambda i, j, k: (i, j)),   # noise (bf16)
            ],
            out_specs=pl.BlockSpec((tm, tn), lambda i, j, k: (i, j)),
            scratch_shapes=[
                pltpu.VMEM((tm, tn), jnp.float32),   # latent_mean accumulator
                pltpu.VMEM((tm, tn), jnp.float32),   # latent_variance accumulator
            ],
        ),
        compiler_params=pltpu.CompilerParams(
            dimension_semantics=("parallel", "parallel", "arbitrary"),
            vmem_limit_bytes=vmem_limit,
        ),
        cost_estimate=cost,
    )(f_b, aux_p, mean_p, var_p, noise_p)

    if Bp != B or Coutp != Cout:
        out_p = out_p[:B, :Cout]
    return out_p


def push_forward(aux0, scale, shift):
    """Tiny glue standing in for `forward_bijections` (single affine bijection)."""
    # TODO(synk): real normalizing-flow bijections would be supplied externally.
    aux = aux0 * scale + shift
    log_det = jnp.sum(jnp.log(jnp.abs(scale)))
    return aux, log_det


def _reference_bf16(features, aux, mean, variance, noise):
    """Pure-JAX reference with the exact same rounding path as the kernel."""
    fb = features.astype(jnp.bfloat16).astype(jnp.float32)
    xa = (fb * aux[None, :]).astype(jnp.bfloat16)
    x2 = (fb * fb).astype(jnp.bfloat16)
    m = mean.astype(jnp.bfloat16)
    v = variance.astype(jnp.bfloat16)
    lm = jnp.dot(xa, m, preferred_element_type=jnp.float32)
    lv = jnp.dot(x2, v, preferred_element_type=jnp.float32)
    nb = noise.astype(jnp.bfloat16).astype(jnp.float32)
    return lm + jnp.sqrt(lv) * nb


if __name__ == "__main__":
    key = jax.random.PRNGKey(0)

    # Two configurations: the tiny module-like shape and one that exercises
    # the divisor-aware tiling (Cout=384 -> tn=384, no padded columns).
    for (B, Cin, Cout) in [(8, 32, 64), (128, 256, 384)]:
        key, k_mean, k_logvar, k_feat, k_aux, k_noise = jax.random.split(key, 6)

        # Parameters (deterministic synthetic init, matching __init__ shapes):
        mean = jax.random.normal(k_mean, (Cin, Cout), dtype=jnp.float32) * jnp.sqrt(
            2.0 / (Cin + Cout)
        )
        log_variance = jnp.exp(jnp.float32(-9.0)) + 0.001 * jax.random.normal(
            k_logvar, (Cin, Cout), dtype=jnp.float32
        )
        variance = jnp.exp(log_variance)

        # Inputs / stochastic samples (deterministic via PRNGKey(0) splits):
        features = jax.random.normal(k_feat, (B, Cin), dtype=jnp.float32)
        aux0 = 1.0 + jax.random.normal(k_aux, (Cin,), dtype=jnp.float32)  # Normal(1,1)
        noise = jax.random.normal(k_noise, (B, Cout), dtype=jnp.float32)  # Normal(0,1)

        # push_forward through (synthetic) bijections — glue, plain JAX.
        scale = jnp.full((Cin,), 1.1, dtype=jnp.float32)
        shift = jnp.full((Cin,), 0.1, dtype=jnp.float32)
        aux, _ = push_forward(aux0, scale, shift)

        out = mnf_linear_forward(features, aux, mean, variance, noise)
        out = jax.block_until_ready(out)
        assert out.shape == (B, Cout)

        # Tight check against the identically-rounded bf16/f32 reference.
        ref = _reference_bf16(features, aux, mean, variance, noise)
        assert jnp.allclose(out, ref, atol=2e-3, rtol=2e-3), "mismatch vs bf16 reference"

        # Loose check against the full-f32 forward semantics of the module.
        ref_f32 = (aux * features) @ mean + jnp.sqrt((features**2) @ variance) * noise
        assert jnp.allclose(out, ref_f32, atol=5e-2, rtol=5e-2), "mismatch vs f32 reference"

    print("KERNEL_OK")
</pallas_src>

<mosaic_0001>
module attributes {stable_mosaic.version = 11 : i64} {
  func.func @_mnf_linear_kernel(%arg0: i32, %arg1: i32, %arg2: i32, %arg3: memref<16x128xbf16, #tpu.memory_space<vmem>>, %arg4: memref<1x128xf32, #tpu.memory_space<vmem>>, %arg5: memref<128x128xbf16, #tpu.memory_space<vmem>>, %arg6: memref<128x128xbf16, #tpu.memory_space<vmem>>, %arg7: memref<16x128xbf16, #tpu.memory_space<vmem>>, %arg8: memref<16x128xf32, #tpu.memory_space<vmem>>, %arg9: memref<16x128xf32, #tpu.memory_space<vmem>>, %arg10: memref<16x128xf32, #tpu.memory_space<vmem>>) attributes {dimension_semantics = [#tpu.dimension_semantics<parallel>, #tpu.dimension_semantics<parallel>, #tpu.dimension_semantics<arbitrary>], iteration_bounds = array<i64: 1, 1, 1>, scalar_prefetch = 0 : i64, scratch_operands = 2 : i64, tpu.core_type = #tpu.core_type<tc>, window_params = [{transform_indices = @transform_0, window_bounds = array<i64: 16, 128>}, {transform_indices = @transform_1, window_bounds = array<i64: 1, 128>}, {transform_indices = @transform_2, window_bounds = array<i64: 128, 128>}, {transform_indices = @transform_3, window_bounds = array<i64: 128, 128>}, {transform_indices = @transform_4, window_bounds = array<i64: 16, 128>}, {transform_indices = @transform_5, window_bounds = array<i64: 16, 128>}]} {
    %c0_i32 = arith.constant 0 : i32
    %0 = arith.cmpi eq, %arg2, %c0_i32 : i32
    %1 = arith.extui %0 : i1 to i32
    %c0_i32_0 = arith.constant 0 : i32
    %2 = arith.cmpi ne, %1, %c0_i32_0 : i32
    scf.if %2 {
      %cst_19 = arith.constant 0.000000e+00 : f32
      %24 = vector.broadcast %cst_19 : f32 to vector<16x128xf32>
      %c0_20 = arith.constant 0 : index
      %c0_21 = arith.constant 0 : index
      %25 = vector.load %arg9[%c0_20, %c0_21] : memref<16x128xf32, #tpu.memory_space<vmem>>, vector<16x128xf32>
      tpu.vector_store %arg9[%c0_20, %c0_21], %24 {strides = array<i32>} : memref<16x128xf32, #tpu.memory_space<vmem>>, vector<16x128xf32>,
      %cst_22 = arith.constant 0.000000e+00 : f32
      %26 = vector.broadcast %cst_22 : f32 to vector<16x128xf32>
      %c0_23 = arith.constant 0 : index
      %c0_24 = arith.constant 0 : index
      %27 = vector.load %arg10[%c0_23, %c0_24] : memref<16x128xf32, #tpu.memory_space<vmem>>, vector<16x128xf32>
      tpu.vector_store %arg10[%c0_23, %c0_24], %26 {strides = array<i32>} : memref<16x128xf32, #tpu.memory_space<vmem>>, vector<16x128xf32>,
    } else {
    }
    %c0 = arith.constant 0 : index
    %c0_1 = arith.constant 0 : index
    %3 = vector.load %arg3[%c0, %c0_1] : memref<16x128xbf16, #tpu.memory_space<vmem>>, vector<16x128xbf16>
    %4 = arith.extf %3 : vector<16x128xbf16> to vector<16x128xf32>
    %c0_2 = arith.constant 0 : index
    %c0_3 = arith.constant 0 : index
    %5 = vector.load %arg4[%c0_2, %c0_3] : memref<1x128xf32, #tpu.memory_space<vmem>>, vector<1x128xf32>
    %6 = vector.broadcast %5 : vector<1x128xf32> to vector<16x128xf32>
    %7 = arith.mulf %4, %6 : vector<16x128xf32>
    %8 = arith.truncf %7 : vector<16x128xf32> to vector<16x128xbf16>
    %9 = arith.mulf %4, %4 : vector<16x128xf32>
    %10 = arith.truncf %9 : vector<16x128xf32> to vector<16x128xbf16>
    %c0_4 = arith.constant 0 : index
    %c0_5 = arith.constant 0 : index
    %11 = vector.load %arg9[%c0_4, %c0_5] : memref<16x128xf32, #tpu.memory_space<vmem>>, vector<16x128xf32>
    %c0_6 = arith.constant 0 : index
    %c0_7 = arith.constant 0 : index
    %12 = vector.load %arg5[%c0_6, %c0_7] : memref<128x128xbf16, #tpu.memory_space<vmem>>, vector<128x128xbf16>
    %cst = arith.constant dense<0.000000e+00> : vector<16x128xf32>
    %13 = tpu.matmul %8, %12, %cst {dimension_numbers = #tpu.dot_dimension_numbers<[1], [0], [0], [1], [0, 0, 1, 1], [], []>} : vector<16x128xbf16>, vector<128x128xbf16>, vector<16x128xf32> -> vector<16x128xf32>
    %14 = arith.addf %11, %13 : vector<16x128xf32>
    %c0_8 = arith.constant 0 : index
    %c0_9 = arith.constant 0 : index
    %15 = vector.load %arg9[%c0_8, %c0_9] : memref<16x128xf32, #tpu.memory_space<vmem>>, vector<16x128xf32>
    tpu.vector_store %arg9[%c0_8, %c0_9], %14 {strides = array<i32>} : memref<16x128xf32, #tpu.memory_space<vmem>>, vector<16x128xf32>,
    %c0_10 = arith.constant 0 : index
    %c0_11 = arith.constant 0 : index
    %16 = vector.load %arg10[%c0_10, %c0_11] : memref<16x128xf32, #tpu.memory_space<vmem>>, vector<16x128xf32>
    %c0_12 = arith.constant 0 : index
    %c0_13 = arith.constant 0 : index
    %17 = vector.load %arg6[%c0_12, %c0_13] : memref<128x128xbf16, #tpu.memory_space<vmem>>, vector<128x128xbf16>
    %cst_14 = arith.constant dense<0.000000e+00> : vector<16x128xf32>
    %18 = tpu.matmul %10, %17, %cst_14 {dimension_numbers = #tpu.dot_dimension_numbers<[1], [0], [0], [1], [0, 0, 1, 1], [], []>} : vector<16x128xbf16>, vector<128x128xbf16>, vector<16x128xf32> -> vector<16x128xf32>
    %19 = arith.addf %16, %18 : vector<16x128xf32>
    %c0_15 = arith.constant 0 : index
    %c0_16 = arith.constant 0 : index
    %20 = vector.load %arg10[%c0_15, %c0_16] : memref<16x128xf32, #tpu.memory_space<vmem>>, vector<16x128xf32>
    tpu.vector_store %arg10[%c0_15, %c0_16], %19 {strides = array<i32>} : memref<16x128xf32, #tpu.memory_space<vmem>>, vector<16x128xf32>,
    %c0_i32_17 = arith.constant 0 : i32
    %21 = arith.cmpi eq, %arg2, %c0_i32_17 : i32
    %22 = arith.extui %21 : i1 to i32
    %c0_i32_18 = arith.constant 0 : i32
    %23 = arith.cmpi ne, %22, %c0_i32_18 : i32
    scf.if %23 {
      %c0_19 = arith.constant 0 : index
      %c0_20 = arith.constant 0 : index
      %24 = vector.load %arg9[%c0_19, %c0_20] : memref<16x128xf32, #tpu.memory_space<vmem>>, vector<16x128xf32>
      %c0_21 = arith.constant 0 : index
      %c0_22 = arith.constant 0 : index
      %25 = vector.load %arg10[%c0_21, %c0_22] : memref<16x128xf32, #tpu.memory_space<vmem>>, vector<16x128xf32>
      %26 = math.sqrt %25 : vector<16x128xf32>
      %c0_23 = arith.constant 0 : index
      %c0_24 = arith.constant 0 : index
      %27 = vector.load %arg7[%c0_23, %c0_24] : memref<16x128xbf16, #tpu.memory_space<vmem>>, vector<16x128xbf16>
      %28 = arith.extf %27 : vector<16x128xbf16> to vector<16x128xf32>
      %29 = arith.mulf %26, %28 : vector<16x128xf32>
      %30 = arith.addf %24, %29 : vector<16x128xf32>
      %c0_25 = arith.constant 0 : index
      %c0_26 = arith.constant 0 : index
      %31 = vector.load %arg8[%c0_25, %c0_26] : memref<16x128xf32, #tpu.memory_space<vmem>>, vector<16x128xf32>
      tpu.vector_store %arg8[%c0_25, %c0_26], %30 {strides = array<i32>} : memref<16x128xf32, #tpu.memory_space<vmem>>, vector<16x128xf32>,
    } else {
    }
    return
  }
  func.func @transform_0(%arg0: i32, %arg1: i32, %arg2: i32) -> (i32, i32) {
    %c0_i32 = arith.constant 0 : i32
    return %arg0, %arg2 : i32, i32
  }
  func.func @transform_1(%arg0: i32, %arg1: i32, %arg2: i32) -> (i32, i32) {
    %c0_i32 = arith.constant 0 : i32
    %c0_i32_0 = arith.constant 0 : i32
    return %c0_i32, %arg2 : i32, i32
  }
  func.func @transform_2(%arg0: i32, %arg1: i32, %arg2: i32) -> (i32, i32) {
    %c0_i32 = arith.constant 0 : i32
    return %arg2, %arg1 : i32, i32
  }
  func.func @transform_3(%arg0: i32, %arg1: i32, %arg2: i32) -> (i32, i32) {
    %c0_i32 = arith.constant 0 : i32
    return %arg2, %arg1 : i32, i32
  }
  func.func @transform_4(%arg0: i32, %arg1: i32, %arg2: i32) -> (i32, i32) {
    %c0_i32 = arith.constant 0 : i32
    return %arg0, %arg1 : i32, i32
  }
  func.func @transform_5(%arg0: i32, %arg1: i32, %arg2: i32) -> (i32, i32) {
    %c0_i32 = arith.constant 0 : i32
    return %arg0, %arg1 : i32, i32
  }
}

</mosaic_0001>

<llo_original>
// kernel: tpu_custom_call.1
$region0: #{tpu_custom_call.1}
  #allocation0 [shape = 'u32[]', space=smem, size = 0x4, offset = 0x4, fixed_abs, tag = 'smem constant byte address 0x4 - core index']
  #allocation1 [shape = 'u32[144,128]{1,0:T(1,128)}', space=vmem, size = 0x12000, scoped, tag = 'internal scratch']
  #allocation2 [shape = 'f32[16,128]{1,0:T(8,128)}', space=vmem, size = 0x2000, scoped, tag = 'scratch operand']
  #allocation3 [shape = 'f32[16,128]{1,0:T(8,128)}', space=vmem, size = 0x2000, scoped, tag = 'scratch operand']
  %s0 = inlined_call_operand.hbm [shape: bf16[16,128], index: 0, kind: input, shape index: {}]
  %s1 = inlined_call_operand.vmem [shape: f32[1,128], index: 1, kind: input, shape index: {}]
  %s2 = inlined_call_operand.hbm [shape: bf16[128,128], index: 2, kind: input, shape index: {}]
  %s3 = inlined_call_operand.hbm [shape: bf16[128,128], index: 3, kind: input, shape index: {}]
  %s4 = inlined_call_operand.vmem [shape: bf16[16,128], index: 4, kind: input, shape index: {}]
  %s5 = inlined_call_operand.hbm [shape: f32[16,128], index: 5, kind: output, shape index: {}]
  %s6 = sld [smem:[#allocation0]]
  $region50: #{tpu_custom_call.1} parent=0
    _
  %s8 = ssub.s32 1, %s6
  %s9 = scalar_select 0, %s8, %s6
  $region1: #{tpu_custom_call.1} parent=0
    #allocation4 [shape = 'u8[4096]{0}', space=vmem, size = 0x1000, scoped, tag = 'input window, operand 0, single buffered']
    #allocation5 [shape = 's32[1]{0}', space=sflag, size = 0x4, scoped, tag = 'scoped memory for tpu_custom_call.1']
    #allocation6 [shape = 's32[1]{0}', space=sflag, size = 0x4, scoped, tag = 'scoped memory for tpu_custom_call.1']
    #allocation7 [shape = 'u8[32768]{0}', space=vmem, size = 0x8000, scoped, tag = 'input window, operand 2, single buffered']
    #allocation8 [shape = 's32[1]{0}', space=sflag, size = 0x4, scoped, tag = 'scoped memory for tpu_custom_call.1']
    #allocation9 [shape = 'u8[32768]{0}', space=vmem, size = 0x8000, scoped, tag = 'input window, operand 3, single buffered']
    #allocation10 [shape = 'u8[8192]{0}', space=vmem, size = 0x2000, scoped, tag = 'output window, operand 0, single buffered']
    %10 = vsyncpa [#allocation5], 0
    %11 = vsyncpa [#allocation8], 0
    %12 = vsyncpa [#allocation6], 0
    // Predicated region
    $region2: #{tpu_custom_call.1} parent=1 // pred_check
      _
    $region3: #{tpu_custom_call.1} parent=1 // pred_check_branch
      %14 = sbr.rel (0) target = $region5
    $region4: #{tpu_custom_call.1} parent=1 // pred_region
      %s16 = ssub.s32 128, 128
      %17 = vsyncadd [#allocation5], %s16
      %s18 = sshll.u32 [#allocation4], 4
      %s19 = int_to_ptr.vmem [resolvable:$true] %s18
      %24 = dma.hbm_to_vmem [thread:$0]  %s0, 128, %s19, [#allocation5], 64, 64, 4
    $region5: #{tpu_custom_call.1} parent=1 // pred_fallthru
      _
    // Predicated region
    $region6: #{tpu_custom_call.1} parent=1 // pred_check
      _
    $region7: #{tpu_custom_call.1} parent=1 // pred_check_branch
      %26 = sbr.rel (0) target = $region9
    $region8: #{tpu_custom_call.1} parent=1 // pred_region
      _
    $region9: #{tpu_custom_call.1} parent=1 // pred_fallthru
      _
    // Predicated region
    $region10: #{tpu_custom_call.1} parent=1 // pred_check
      _
    $region11: #{tpu_custom_call.1} parent=1 // pred_check_branch
      %28 = sbr.rel (0) target = $region13
    $region12: #{tpu_custom_call.1} parent=1 // pred_region
      %s30 = ssub.s32 1024, 1024
      %31 = vsyncadd [#allocation8], %s30
      %s32 = sshll.u32 [#allocation7], 4
      %s33 = int_to_ptr.vmem [resolvable:$true] %s32
      %38 = dma.hbm_to_vmem [thread:$0]  %s2, 1024, %s33, [#allocation8], 64, 64, 4
    $region13: #{tpu_custom_call.1} parent=1 // pred_fallthru
      _
    // Predicated region
    $region14: #{tpu_custom_call.1} parent=1 // pred_check
      _
    $region15: #{tpu_custom_call.1} parent=1 // pred_check_branch
      %40 = sbr.rel (0) target = $region17
    $region16: #{tpu_custom_call.1} parent=1 // pred_region
      %s42 = ssub.s32 1024, 1024
      %43 = vsyncadd [#allocation8], %s42
      %s44 = sshll.u32 [#allocation9], 4
      %s45 = int_to_ptr.vmem [resolvable:$true] %s44
      %50 = dma.hbm_to_vmem [thread:$0]  %s3, 1024, %s45, [#allocation8], 64, 64, 4
    $region17: #{tpu_custom_call.1} parent=1 // pred_fallthru
      _
    // Predicated region
    $region18: #{tpu_custom_call.1} parent=1 // pred_check
      _
    $region19: #{tpu_custom_call.1} parent=1 // pred_check_branch
      %52 = sbr.rel (0) target = $region21
    $region20: #{tpu_custom_call.1} parent=1 // pred_region
      _
    $region21: #{tpu_custom_call.1} parent=1 // pred_fallthru
      _
    // Predicated region
    $region22: #{tpu_custom_call.1} parent=1 // pred_check
      _
    $region23: #{tpu_custom_call.1} parent=1 // pred_check_branch
      %54 = sbr.rel (0) target = $region25
    $region24: #{tpu_custom_call.1} parent=1 // pred_region
      %55 = dma.done [#allocation5], 128
    $region25: #{tpu_custom_call.1} parent=1 // pred_fallthru
      _
    // Predicated region
    $region26: #{tpu_custom_call.1} parent=1 // pred_check
      _
    $region27: #{tpu_custom_call.1} parent=1 // pred_check_branch
      %57 = sbr.rel (0) target = $region29
    $region28: #{tpu_custom_call.1} parent=1 // pred_region
      %58 = dma.done [#allocation8], 1024
    $region29: #{tpu_custom_call.1} parent=1 // pred_fallthru
      _
    // Predicated region
    $region30: #{tpu_custom_call.1} parent=1 // pred_check
      _
    $region31: #{tpu_custom_call.1} parent=1 // pred_check_branch
      %60 = sbr.rel (0) target = $region33
    $region32: #{tpu_custom_call.1} parent=1 // pred_region
      %61 = dma.done [#allocation8], 1024
    $region33: #{tpu_custom_call.1} parent=1 // pred_fallthru
      _
    %p63 = scmp.eq.s32.totalorder 0, 0
    // Predicated region
    $region34: #{tpu_custom_call.1} parent=1 // pred_check
      %p64 = pneg %p63
    $region35: #{tpu_custom_call.1} parent=1 // pred_check_branch
      %66 = sbr.rel (%p64) target = $region37
    $region36: #{tpu_custom_call.1} parent=1 // pred_region
      %67 = vst [vmem:[#allocation2] sm:$0xff] 0.0
      %68 = vst [vmem:[#allocation2 + $0x8] sm:$0xff] 0.0
      %69 = vst [vmem:[#allocation3] sm:$0xff] 0.0
      %70 = vst [vmem:[#allocation3 + $0x8] sm:$0xff] 0.0
    $region37: #{tpu_custom_call.1} parent=1 // pred_fallthru
      _
    %v71 = vld [vmem:[#allocation4] sm:$0xf]
    %v72 = vld [vmem:[#allocation4 + $0x4] sm:$0xf]
    %v73 = vunpack.c.l.bf16 %v71
    %v74 = vunpack.c.l.bf16 %v72
    %v75 = vld [vmem:[%s1] sm:$0x1]
    %v77 = vlaneseq
    %v78 = vshrl.u32 %v77, 7
    %v79 = vsub.s32 0, %v78
    %v80 = vrot.slane %v75, %v79
    %v82 = vmul.f32 %v73, %v80
    %v83 = vmul.f32 %v74, %v80
    %v84 = vpack.c.bf16 %v83, %v82
    %v85 = vmul.f32 %v73, %v73
    %v86 = vmul.f32 %v74, %v74
    %v87 = vpack.c.bf16 %v86, %v85
    %v88 = vld [vmem:[#allocation2] sm:$0xff]
    %v89 = vld [vmem:[#allocation2 + $0x8] sm:$0xff]
    %v90 = vld [vmem:[#allocation7] sm:$0xf]
    %v91 = vld [vmem:[#allocation7 + $0x4] sm:$0xf]
    %v92 = vld [vmem:[#allocation7 + $0x8] sm:$0xf]
    %v93 = vld [vmem:[#allocation7 + $0xc] sm:$0xf]
    %v94 = vld [vmem:[#allocation7 + $0x10] sm:$0xf]
    %v95 = vld [vmem:[#allocation7 + $0x14] sm:$0xf]
    %v96 = vld [vmem:[#allocation7 + $0x18] sm:$0xf]
    %v97 = vld [vmem:[#allocation7 + $0x1c] sm:$0xf]
    %v98 = vld [vmem:[#allocation7 + $0x20] sm:$0xf]
    %v99 = vld [vmem:[#allocation7 + $0x24] sm:$0xf]
    %v100 = vld [vmem:[#allocation7 + $0x28] sm:$0xf]
    %v101 = vld [vmem:[#allocation7 + $0x2c] sm:$0xf]
    %v102 = vld [vmem:[#allocation7 + $0x30] sm:$0xf]
    %v103 = vld [vmem:[#allocation7 + $0x34] sm:$0xf]
    %v104 = vld [vmem:[#allocation7 + $0x38] sm:$0xf]
    %v105 = vld [vmem:[#allocation7 + $0x3c] sm:$0xf]
    %v122 = vunpack.c.l.b16 %v90
    %v123 = vunpack.c.l.b16 %v91
    %v124 = vunpack.c.l.b16 %v92
    %v125 = vunpack.c.l.b16 %v93
    %v126 = vunpack.c.l.b16 %v94
    %v127 = vunpack.c.l.b16 %v95
    %v128 = vunpack.c.l.b16 %v96
    %v129 = vunpack.c.l.b16 %v97
    %v130 = vunpack.c.l.b16 %v98
    %v131 = vunpack.c.l.b16 %v99
    %v132 = vunpack.c.l.b16 %v100
    %v133 = vunpack.c.l.b16 %v101
    %v134 = vunpack.c.l.b16 %v102
    %v135 = vunpack.c.l.b16 %v103
    %v136 = vunpack.c.l.b16 %v104
    %v137 = vunpack.c.l.b16 %v105
    %v138 = vpack.c.b16 %v123, %v122
    %v139 = vpack.c.b16 %v125, %v124
    %v140 = vpack.c.b16 %v127, %v126
    %v141 = vpack.c.b16 %v129, %v128
    %v142 = vpack.c.b16 %v131, %v130
    %v143 = vpack.c.b16 %v133, %v132
    %v144 = vpack.c.b16 %v135, %v134
    %v145 = vpack.c.b16 %v137, %v136
    %154 = vmatprep.subr.bf16.mxu0 0
    %155 = vmatpush1.bf16.msra.mxu0 %v138
    %156 = vmatprep.subr.bf16.mxu0 0
    %157 = vmatpush1.bf16.msra.mxu0 %v139
    %158 = vmatprep.subr.bf16.mxu0 0
    %159 = vmatpush1.bf16.msra.mxu0 %v140
    %160 = vmatprep.subr.bf16.mxu0 0
    %161 = vmatpush1.bf16.msra.mxu0 %v141
    %162 = vmatprep.subr.bf16.mxu0 0
    %163 = vmatpush1.bf16.msra.mxu0 %v142
    %164 = vmatprep.subr.bf16.mxu0 0
    %165 = vmatpush1.bf16.msra.mxu0 %v143
    %166 = vmatprep.subr.bf16.mxu0 0
    %167 = vmatpush1.bf16.msra.mxu0 %v144
    %168 = vmatprep.subr.bf16.mxu0 0
    %169 = vmatpush1.bf16.msra.mxu0 %v145
    %170 = vmatprep.subr.bf16.mxu0 0
    %171 = vmatpush1.bf16.msra.mxu0 0
    %172 = vmatprep.subr.bf16.mxu0 0
    %173 = vmatpush1.bf16.msra.mxu0 0
    %174 = vmatprep.subr.bf16.mxu0 0
    %175 = vmatpush1.bf16.msra.mxu0 0
    %176 = vmatprep.subr.bf16.mxu0 0
    %177 = vmatpush1.bf16.msra.mxu0 0
    %178 = vmatprep.subr.bf16.mxu0 0
    %179 = vmatpush1.bf16.msra.mxu0 0
    %180 = vmatprep.subr.bf16.mxu0 0
    %181 = vmatpush1.bf16.msra.mxu0 0
    %182 = vmatprep.subr.bf16.mxu0 0
    %183 = vmatpush1.bf16.msra.mxu0 0
    %184 = vmatprep.subr.bf16.mxu0 0
    %185 = vmatpush1.bf16.msra.mxu0 0
    %186 = vmatprep.mubr.bf16.mxu0 0
    %187 = vmatmul.mubr.bf16.gmra.mrb[0].mxu0 %v84
    %v188 = vpop.f32.mrb[0].mxu0
    %v189 = vadd.f32 0.0, %v188
    %v190 = vpop.f32.mrb[0].mxu0
    %v191 = vpop.f32.mrb[0].mxu0
    %v192 = vadd.f32 0.0, %v191
    %v193 = vpop.f32.mrb[0].mxu0
    %194 = vdwg.mxu0
    %v195 = vadd.f32 %v88, %v189
    %v196 = vadd.f32 %v89, %v192
    %197 = vst [vmem:[#allocation2] sm:$0xff] %v195
    %198 = vst [vmem:[#allocation2 + $0x8] sm:$0xff] %v196
    %v199 = vld [vmem:[#allocation3] sm:$0xff]
    %v200 = vld [vmem:[#allocation3 + $0x8] sm:$0xff]
    %v201 = vld [vmem:[#allocation9] sm:$0xf]
    %v202 = vld [vmem:[#allocation9 + $0x4] sm:$0xf]
    %v203 = vld [vmem:[#allocation9 + $0x8] sm:$0xf]
    %v204 = vld [vmem:[#allocation9 + $0xc] sm:$0xf]
    %v205 = vld [vmem:[#allocation9 + $0x10] sm:$0xf]
    %v206 = vld [vmem:[#allocation9 + $0x14] sm:$0xf]
    %v207 = vld [vmem:[#allocation9 + $0x18] sm:$0xf]
    %v208 = vld [vmem:[#allocation9 + $0x1c] sm:$0xf]
    %v209 = vld [vmem:[#allocation9 + $0x20] sm:$0xf]
    %v210 = vld [vmem:[#allocation9 + $0x24] sm:$0xf]
    %v211 = vld [vmem:[#allocation9 + $0x28] sm:$0xf]
    %v212 = vld [vmem:[#allocation9 + $0x2c] sm:$0xf]
    %v213 = vld [vmem:[#allocation9 + $0x30] sm:$0xf]
    %v214 = vld [vmem:[#allocation9 + $0x34] sm:$0xf]
    %v215 = vld [vmem:[#allocation9 + $0x38] sm:$0xf]
    %v216 = vld [vmem:[#allocation9 + $0x3c] sm:$0xf]
    %v233 = vunpack.c.l.b16 %v201
    %v234 = vunpack.c.l.b16 %v202
    %v235 = vunpack.c.l.b16 %v203
    %v236 = vunpack.c.l.b16 %v204
    %v237 = vunpack.c.l.b16 %v205
    %v238 = vunpack.c.l.b16 %v206
    %v239 = vunpack.c.l.b16 %v207
    %v240 = vunpack.c.l.b16 %v208
    %v241 = vunpack.c.l.b16 %v209
    %v242 = vunpack.c.l.b16 %v210
    %v243 = vunpack.c.l.b16 %v211
    %v244 = vunpack.c.l.b16 %v212
    %v245 = vunpack.c.l.b16 %v213
    %v246 = vunpack.c.l.b16 %v214
    %v247 = vunpack.c.l.b16 %v215
    %v248 = vunpack.c.l.b16 %v216
    %v249 = vpack.c.b16 %v234, %v233
    %v250 = vpack.c.b16 %v236, %v235
    %v251 = vpack.c.b16 %v238, %v237
    %v252 = vpack.c.b16 %v240, %v239
    %v253 = vpack.c.b16 %v242, %v241
    %v254 = vpack.c.b16 %v244, %v243
    %v255 = vpack.c.b16 %v246, %v245
    %v256 = vpack.c.b16 %v248, %v247
    %265 = vmatprep.subr.bf16.mxu0 0
    %266 = vmatpush1.bf16.msra.mxu0 %v249
    %267 = vmatprep.subr.bf16.mxu0 0
    %268 = vmatpush1.bf16.msra.mxu0 %v250
    %269 = vmatprep.subr.bf16.mxu0 0
    %270 = vmatpush1.bf16.msra.mxu0 %v251
    %271 = vmatprep.subr.bf16.mxu0 0
    %272 = vmatpush1.bf16.msra.mxu0 %v252
    %273 = vmatprep.subr.bf16.mxu0 0
    %274 = vmatpush1.bf16.msra.mxu0 %v253
    %275 = vmatprep.subr.bf16.mxu0 0
    %276 = vmatpush1.bf16.msra.mxu0 %v254
    %277 = vmatprep.subr.bf16.mxu0 0
    %278 = vmatpush1.bf16.msra.mxu0 %v255
    %279 = vmatprep.subr.bf16.mxu0 0
    %280 = vmatpush1.bf16.msra.mxu0 %v256
    %281 = vmatprep.subr.bf16.mxu0 0
    %282 = vmatpush1.bf16.msra.mxu0 0
    %283 = vmatprep.subr.bf16.mxu0 0
    %284 = vmatpush1.bf16.msra.mxu0 0
    %285 = vmatprep.subr.bf16.mxu0 0
    %286 = vmatpush1.bf16.msra.mxu0 0
    %287 = vmatprep.subr.bf16.mxu0 0
    %288 = vmatpush1.bf16.msra.mxu0 0
    %289 = vmatprep.subr.bf16.mxu0 0
    %290 = vmatpush1.bf16.msra.mxu0 0
    %291 = vmatprep.subr.bf16.mxu0 0
    %292 = vmatpush1.bf16.msra.mxu0 0
    %293 = vmatprep.subr.bf16.mxu0 0
    %294 = vmatpush1.bf16.msra.mxu0 0
    %295 = vmatprep.subr.bf16.mxu0 0
    %296 = vmatpush1.bf16.msra.mxu0 0
    %297 = vmatprep.mubr.bf16.mxu0 0
    %298 = vmatmul.mubr.bf16.gmra.mrb[0].mxu0 %v87
    %v299 = vpop.f32.mrb[0].mxu0
    %v300 = vadd.f32 0.0, %v299
    %v301 = vpop.f32.mrb[0].mxu0
    %v302 = vpop.f32.mrb[0].mxu0
    %v303 = vadd.f32 0.0, %v302
    %v304 = vpop.f32.mrb[0].mxu0
    %305 = vdwg.mxu0
    %v306 = vadd.f32 %v199, %v300
    %v307 = vadd.f32 %v200, %v303
    %308 = vst [vmem:[#allocation3] sm:$0xff] %v306
    %309 = vst [vmem:[#allocation3 + $0x8] sm:$0xff] %v307
    // Predicated region
    $region38: #{tpu_custom_call.1} parent=1 // pred_check
      %p310 = pneg %p63
    $region39: #{tpu_custom_call.1} parent=1 // pred_check_branch
      %312 = sbr.rel (%p310) target = $region41
    $region40: #{tpu_custom_call.1} parent=1 // pred_region
      %v313 = vld [vmem:[#allocation2] sm:$0xff]
      %v314 = vld [vmem:[#allocation2 + $0x8] sm:$0xff]
      %v315 = vld [vmem:[#allocation3] sm:$0xff]
      %v316 = vld [vmem:[#allocation3 + $0x8] sm:$0xff]
      %v317 = vrsqrt.pop %v315
      %v318 = vmul.f32 %v315, %v317
      %vm319 = vcmp.eq.f32.partialorder %v315, inf
      %v320 = vsel %vm319, %v315, %v318
      %vm321 = vcmp.eq.f32.partialorder %v315, 0.0
      %v322 = vand.u32 %v315, 2147483648
      %v323 = vsel %vm321, %v322, %v320
      %v324 = vrsqrt.pop %v316
      %v325 = vmul.f32 %v316, %v324
      %vm326 = vcmp.eq.f32.partialorder %v316, inf
      %v327 = vsel %vm326, %v316, %v325
      %vm328 = vcmp.eq.f32.partialorder %v316, 0.0
      %v329 = vand.u32 %v316, 2147483648
      %v330 = vsel %vm328, %v329, %v327
      %v331 = vld [vmem:[%s4] sm:$0xf]
      %v332 = vld [vmem:[%s4 + $0x4] sm:$0xf]
      %v333 = vunpack.c.l.bf16 %v331
      %v334 = vunpack.c.l.bf16 %v332
      %v335 = vmul.f32 %v323, %v333
      %v336 = vmul.f32 %v330, %v334
      %v337 = vadd.f32 %v313, %v335
      %v338 = vadd.f32 %v314, %v336
      %339 = vst [vmem:[#allocation10] sm:$0xff] %v337
      %340 = vst [vmem:[#allocation10 + $0x8] sm:$0xff] %v338
    $region41: #{tpu_custom_call.1} parent=1 // pred_fallthru
      _
    // Predicated region
    $region42: #{tpu_custom_call.1} parent=1 // pred_check
      _
    $region43: #{tpu_custom_call.1} parent=1 // pred_check_branch
      %342 = sbr.rel (0) target = $region45
    $region44: #{tpu_custom_call.1} parent=1 // pred_region
      %s344 = ssub.s32 256, 256
      %345 = vsyncadd [#allocation6], %s344
      %s346 = sshll.u32 [#allocation10], 4
      %s347 = int_to_ptr.vmem [resolvable:$true] %s346
      %352 = dma.vmem_to_hbm [thread:$0]  %s347, 256, %s5, [#allocation6], 128, 128, 8
    $region45: #{tpu_custom_call.1} parent=1 // pred_fallthru
      _
    // Predicated region
    $region46: #{tpu_custom_call.1} parent=1 // pred_check
      _
    $region47: #{tpu_custom_call.1} parent=1 // pred_check_branch
      %354 = sbr.rel (0) target = $region49
    $region48: #{tpu_custom_call.1} parent=1 // pred_region
      %355 = dma.done [#allocation6], 256
    $region49: #{tpu_custom_call.1} parent=1 // pred_fallthru
      _
    %356 = vsyncpa [#allocation5], 1
    %357 = vsyncpa [#allocation8], 1
    %358 = vsyncpa [#allocation6], 1

</llo_original>
